<compile_context>
chip_gen: v6e
topology: v6e:2x2x1
jax: 0.10.0
libtpu: 0.0.40
codegen_flags: <defaults>
</compile_context>

<pallas_src>
import math
import functools

import jax
import jax.numpy as jnp
from jax.experimental import pallas as pl
from jax.experimental.pallas import tpu as pltpu


_VMEM = pl.BlockSpec(memory_space=pltpu.MemorySpace.VMEM)


# ----------------------------- Pallas kernels -----------------------------

def _linear_kernel(x_ref, w_ref, b_ref, o_ref, *, activation):
    # o = x @ w + b (bf16 MXU operands, f32 accumulation), optionally followed by GELU.
    y = jnp.dot(x_ref[...], w_ref[...], preferred_element_type=jnp.float32) + b_ref[...]
    if activation == "gelu":
        # TODO(synk): torch F.gelu defaults to the exact erf form; tanh approximation used
        # here since erf lowering is not guaranteed in Mosaic (difference ~1e-3).
        c = math.sqrt(2.0 / math.pi)
        y = 0.5 * y * (1.0 + jnp.tanh(c * (y + 0.044715 * y * y * y)))
    o_ref[...] = y.astype(o_ref.dtype)


def _hgt_attention_kernel(q_ref, k_ref, v_ref, att_ref, msg_ref, pri_ref,
                          w_ref, mask_ref, hmask_ref, o_ref):
    # Lane-dense layout:
    #   q: [Nd, hid]  k,v: [Ns, hid]      (bf16)
    #   att,msg: block-diagonal [hid, hid] (bf16)
    #   pri: [H, 1, 1] (already divided by sqrt_dk)
    #   w,mask: [Nd, Ns]   hmask: [H, 1, hid] 0/1 head-lane selector (bf16)
    H = pri_ref.shape[0]
    q = q_ref[...]
    hmask = hmask_ref[...]

    # relation-specific transforms: single wide matmuls (contraction K = hid on the MXU).
    k2 = jnp.dot(k_ref[...], att_ref[...],
                 preferred_element_type=jnp.float32).astype(jnp.bfloat16)    # [Ns, hid]
    v2 = jnp.dot(v_ref[...], msg_ref[...],
                 preferred_element_type=jnp.float32).astype(jnp.bfloat16)    # [Ns, hid]

    Ns, hid = k2.shape

    # per-head dot products without leaving the lane-dense layout: zero the lanes that do not
    # belong to head h, then a head-batched contraction over the full hid axis.
    qh = q[None, :, :] * hmask                                   # [H, Nd, hid]
    k2b = jnp.broadcast_to(k2[None, :, :], (H, Ns, hid))
    v2b = jnp.broadcast_to(v2[None, :, :], (H, Ns, hid))
    scores = jnp.einsum('hdi,hsi->hds', qh, k2b,
                        preferred_element_type=jnp.float32)      # [H, Nd, Ns]
    # relation priority (pre-scaled by 1/sqrt_dk) and edge weights (HGT_weight variant).
    scores = scores * pri_ref[...] * w_ref[...][None]

    # edge_softmax(norm_by='dst'): masked softmax over incoming edges (src axis).
    mask = mask_ref[...][None]                                   # [1, Nd, Ns]
    masked = jnp.where(mask > 0.5, scores, jnp.float32(-1e30))
    masked = masked - jnp.max(masked, axis=-1, keepdims=True)
    p = jnp.exp(masked) * mask                   # rows with zero in-edges aggregate to zero
    denom = jnp.sum(p, axis=-1, keepdims=True)
    denom = jnp.where(denom > 0.0, denom, 1.0)   # guard against all-masked rows (no NaNs)
    p = p * pl.reciprocal(denom, approx=True)

    # message aggregation; keep only head-h lanes from the h-th batch slice, sum over heads.
    out_h = jnp.einsum('hds,hsi->hdi', p.astype(jnp.bfloat16), v2b,
                       preferred_element_type=jnp.float32)       # [H, Nd, hid]
    o_ref[...] = jnp.sum(out_h * hmask, axis=0).astype(o_ref.dtype)   # [Nd, hid]


def _hgt_combine_kernel(t_ref, w_ref, b_ref, h_ref, skip_ref, gamma_ref, beta_ref, o_ref):
    # cross-relation mean (multi_update_all cross_reducer='mean'), a_linear (dropout is
    # identity in eval mode), skip-gated residual, LayerNorm (use_norm=True).
    t = jnp.mean(t_ref[...], axis=0)                              # [Nd, hid] f32
    trans = jnp.dot(t.astype(jnp.bfloat16), w_ref[...],
                    preferred_element_type=jnp.float32) + b_ref[...]
    alpha = jax.nn.sigmoid(skip_ref[...])                         # [1, 1]
    x = trans * alpha + h_ref[...] * (1.0 - alpha)
    mean = jnp.mean(x, axis=-1, keepdims=True)
    var = jnp.mean(jnp.square(x - mean), axis=-1, keepdims=True)
    xn = (x - mean) * jax.lax.rsqrt(var + 1e-5)                   # nn.LayerNorm default eps
    o_ref[...] = (xn * gamma_ref[...] + beta_ref[...]).astype(o_ref.dtype)


# ----------------------------- Pallas wrappers -----------------------------

def linear(x, w, b, activation=None, out_dtype=jnp.float32):
    # x: [N, Din], w: [Din, Dout], b: [1, Dout].  MXU operands cast to bf16 in the wrapper so
    # HBM->VMEM DMA bytes are halved; accumulation stays f32 inside the kernel.
    kernel = functools.partial(_linear_kernel, activation=activation)
    return pl.pallas_call(
        kernel,
        out_shape=jax.ShapeDtypeStruct((x.shape[0], w.shape[1]), out_dtype),
        in_specs=[_VMEM, _VMEM, _VMEM],
        out_specs=_VMEM,
    )(x.astype(jnp.bfloat16), w.astype(jnp.bfloat16), b.astype(jnp.float32))


def hgt_attention(q, k, v, att_bd, msg_bd, pri_scaled, weight, mask, hmask):
    Nd, hid = q.shape
    return pl.pallas_call(
        _hgt_attention_kernel,
        out_shape=jax.ShapeDtypeStruct((Nd, hid), jnp.float32),
        in_specs=[_VMEM] * 9,
        out_specs=_VMEM,
    )(q, k, v, att_bd.astype(jnp.bfloat16), msg_bd.astype(jnp.bfloat16),
      pri_scaled, weight, mask, hmask)


def hgt_combine(t_stack, a_w, a_b, h_prev, skip, gamma, beta):
    return pl.pallas_call(
        _hgt_combine_kernel,
        out_shape=jax.ShapeDtypeStruct(h_prev.shape, jnp.float32),
        in_specs=[_VMEM] * 7,
        out_specs=_VMEM,
    )(t_stack, a_w.astype(jnp.bfloat16), a_b, h_prev, skip, gamma, beta)


# ----------------------------- model glue (plain JAX) -----------------------------

def init_params(key, node_dict, edge_dict, in_size_dict, hid, heads, d_k, num_layers):
    num_types = len(node_dict)
    num_rel = len(edge_dict)

    def lin_init(k, fan_in, fan_out):
        kw, kb = jax.random.split(k)
        bound = 1.0 / math.sqrt(fan_in)
        w = jax.random.uniform(kw, (fan_in, fan_out), jnp.float32, -bound, bound)
        b = jax.random.uniform(kb, (1, fan_out), jnp.float32, -bound, bound)
        return w, b

    params = {'adapt_w': [], 'adapt_b': [], 'layers': []}
    for nt in node_dict:
        key, sub = jax.random.split(key)
        w, b = lin_init(sub, in_size_dict[nt], hid)
        params['adapt_w'].append(w)
        params['adapt_b'].append(b)

    for _ in range(num_layers):
        lp = {'kqv_w': [], 'kqv_b': [], 'a_w': [], 'a_b': [], 'ln_g': [], 'ln_b': []}
        for _t in range(num_types):
            ws, bs = [], []
            for _name in ('k', 'q', 'v'):            # separate inits, then fused K|Q|V
                key, sub = jax.random.split(key)
                w, b = lin_init(sub, hid, hid)
                ws.append(w)
                bs.append(b)
            lp['kqv_w'].append(jnp.concatenate(ws, axis=1))   # [hid, 3*hid]
            lp['kqv_b'].append(jnp.concatenate(bs, axis=1))   # [1, 3*hid]
            key, sub = jax.random.split(key)
            w, b = lin_init(sub, hid, hid)
            lp['a_w'].append(w)
            lp['a_b'].append(b)
            lp['ln_g'].append(jnp.ones((1, hid), jnp.float32))
            lp['ln_b'].append(jnp.zeros((1, hid), jnp.float32))
        key, ka, km = jax.random.split(key, 3)
        xav = math.sqrt(6.0 / (d_k + d_k))            # xavier_uniform-style bound
        lp['rel_att'] = jax.random.uniform(ka, (num_rel, heads, d_k, d_k), jnp.float32, -xav, xav)
        lp['rel_msg'] = jax.random.uniform(km, (num_rel, heads, d_k, d_k), jnp.float32, -xav, xav)
        lp['rel_pri'] = jnp.ones((num_rel, heads), jnp.float32)   # torch init: ones
        lp['skip'] = jnp.ones((num_types,), jnp.float32)          # torch init: ones
        params['layers'].append(lp)
    return params


def make_graph(key, num_nodes, canonical_etypes):
    """Dense per-relation adjacency mask + edge weights (every dst gets >=1 in-edge)."""
    graph = {}
    for (s, e, d) in canonical_etypes:
        Ns, Nd = num_nodes[s], num_nodes[d]
        key, k1, k2 = jax.random.split(key, 3)
        mask = jax.random.uniform(k1, (Nd, Ns)) < 0.5
        diag = (jnp.arange(Nd)[:, None] % Ns) == jnp.arange(Ns)[None, :]
        mask = jnp.logical_or(mask, diag)
        weight = jax.random.uniform(k2, (Nd, Ns), jnp.float32, 0.1, 1.0)
        graph[(s, e, d)] = (mask.astype(jnp.float32), weight)
    return graph


def _block_diag(rel):
    """[H, dk, dk] per-head transform -> block-diagonal [H*dk, H*dk] lane-dense matrix."""
    H, dk, _ = rel.shape
    eye = jnp.eye(H, dtype=rel.dtype)
    full = eye[:, None, :, None] * rel[:, :, None, :]      # [H, dk, H, dk]
    return full.reshape(H * dk, H * dk)


def hgt_layer_forward(lp, h, graph, node_dict, edge_dict, heads, d_k, hmask):
    hid = heads * d_k
    sqrt_dk = math.sqrt(d_k)

    # fused K|Q|V projection -> lane-dense [N, 3*hid] bf16, sliced on the lane axis.
    k_proj, q_proj, v_proj = {}, {}, {}
    for nt, tid in node_dict.items():
        kqv = linear(h[nt], lp['kqv_w'][tid], lp['kqv_b'][tid], out_dtype=jnp.bfloat16)
        k_proj[nt] = kqv[:, :hid]
        q_proj[nt] = kqv[:, hid:2 * hid]
        v_proj[nt] = kqv[:, 2 * hid:]

    # relation transforms as block-diagonal [hid, hid] matrices; pri pre-scaled by 1/sqrt_dk.
    num_rel = lp['rel_att'].shape[0]
    att_bd = [_block_diag(lp['rel_att'][e]) for e in range(num_rel)]
    msg_bd = [_block_diag(lp['rel_msg'][e]) for e in range(num_rel)]
    pri_scaled = (lp['rel_pri'] / sqrt_dk).reshape(num_rel, heads, 1, 1)

    # per-relation attention + message aggregation (lane-dense [Nd, hid] outputs).
    agg = {nt: [] for nt in node_dict}
    for (srct, et, dstt), (mask, weight) in graph.items():
        e_id = edge_dict[et]
        out = hgt_attention(q_proj[dstt], k_proj[srct], v_proj[srct],
                            att_bd[e_id], msg_bd[e_id], pri_scaled[e_id],
                            weight, mask, hmask)
        agg[dstt].append(out)

    new_h = {}
    for nt, tid in node_dict.items():
        # TODO(synk): DGL multi_update_all averages only relations that delivered messages to a
        # node; the toy graph guarantees >=1 in-edge per relation so the plain mean matches.
        t_stack = jnp.stack(agg[nt], axis=0)                   # [R, Nd, hid]
        new_h[nt] = hgt_combine(t_stack, lp['a_w'][tid], lp['a_b'][tid], h[nt],
                                lp['skip'][tid].reshape(1, 1),
                                lp['ln_g'][tid], lp['ln_b'][tid])
    return new_h


def hgt_forward(params, feats, graph, node_dict, edge_dict, heads, d_k, num_layers):
    hid = heads * d_k
    # 0/1 head-lane selector mask, [H, 1, hid] (bf16 so in-kernel MXU operands stay bf16).
    lane_head = jnp.arange(hid) // d_k
    hmask = (lane_head[None, None, :] == jnp.arange(heads)[:, None, None]).astype(jnp.bfloat16)

    h = {}
    for nt, tid in node_dict.items():
        h[nt] = linear(feats[nt], params['adapt_w'][tid], params['adapt_b'][tid],
                       activation='gelu')
    for i in range(num_layers):
        h = hgt_layer_forward(params['layers'][i], h, graph, node_dict, edge_dict,
                              heads, d_k, hmask)
    # NOTE: the reference HGT.forward never applies self.out, so neither do we.
    return h


# ----------------------------- driver -----------------------------

if __name__ == "__main__":
    key = jax.random.PRNGKey(0)

    node_dict = {'user': 0, 'item': 1}
    edge_dict = {'follows': 0, 'buys': 1, 'bought_by': 2}
    canonical_etypes = [('user', 'follows', 'user'),
                        ('user', 'buys', 'item'),
                        ('item', 'bought_by', 'user')]
    in_size_dict = {'user': 16, 'item': 24}
    num_nodes = {'user': 12, 'item': 8}
    hid_size, heads, num_layers = 32, 4, 2
    d_k = hid_size // heads

    key, kp, kg, kf = jax.random.split(key, 4)
    params = init_params(kp, node_dict, edge_dict, in_size_dict, hid_size, heads, d_k, num_layers)
    graph = make_graph(kg, num_nodes, canonical_etypes)

    feats = {}
    fkeys = jax.random.split(kf, len(node_dict))
    for i, nt in enumerate(node_dict):
        feats[nt] = jax.random.normal(fkeys[i], (num_nodes[nt], in_size_dict[nt]), jnp.float32)

    out = hgt_forward(params, feats, graph, node_dict, edge_dict, heads, d_k, num_layers)
    for nt in node_dict:
        jax.block_until_ready(out[nt])
        assert out[nt].shape == (num_nodes[nt], hid_size)
        assert bool(jnp.all(jnp.isfinite(out[nt])))
    print("KERNEL_OK")
</pallas_src>

<mosaic_0001>
module attributes {stable_mosaic.version = 11 : i64} {
  func.func @_linear_kernel(%arg0: memref<12x16xbf16, #tpu.memory_space<vmem>>, %arg1: memref<16x32xbf16, #tpu.memory_space<vmem>>, %arg2: memref<1x32xf32, #tpu.memory_space<vmem>>, %arg3: memref<12x32xf32, #tpu.memory_space<vmem>>) attributes {dimension_semantics = [], scalar_prefetch = 0 : i64, scratch_operands = 0 : i64, tpu.core_type = #tpu.core_type<tc>} {
    %c0 = arith.constant 0 : index
    %c0_0 = arith.constant 0 : index
    %0 = vector.load %arg0[%c0, %c0_0] : memref<12x16xbf16, #tpu.memory_space<vmem>>, vector<12x16xbf16>
    %c0_1 = arith.constant 0 : index
    %c0_2 = arith.constant 0 : index
    %1 = vector.load %arg1[%c0_1, %c0_2] : memref<16x32xbf16, #tpu.memory_space<vmem>>, vector<16x32xbf16>
    %cst = arith.constant dense<0.000000e+00> : vector<12x32xf32>
    %2 = tpu.matmul %0, %1, %cst {dimension_numbers = #tpu.dot_dimension_numbers<[1], [0], [0], [1], [0, 0, 1, 1], [], []>} : vector<12x16xbf16>, vector<16x32xbf16>, vector<12x32xf32> -> vector<12x32xf32>
    %c0_3 = arith.constant 0 : index
    %c0_4 = arith.constant 0 : index
    %3 = vector.load %arg2[%c0_3, %c0_4] : memref<1x32xf32, #tpu.memory_space<vmem>>, vector<1x32xf32>
    %4 = vector.broadcast %3 : vector<1x32xf32> to vector<12x32xf32>
    %5 = arith.addf %2, %4 : vector<12x32xf32>
    %cst_5 = arith.constant 5.000000e-01 : f32
    %6 = vector.broadcast %cst_5 : f32 to vector<12x32xf32>
    %7 = arith.mulf %6, %5 : vector<12x32xf32>
    %cst_6 = arith.constant 4.471500e-02 : f32
    %8 = vector.broadcast %cst_6 : f32 to vector<12x32xf32>
    %9 = arith.mulf %8, %5 : vector<12x32xf32>
    %10 = arith.mulf %9, %5 : vector<12x32xf32>
    %11 = arith.mulf %10, %5 : vector<12x32xf32>
    %12 = arith.addf %5, %11 : vector<12x32xf32>
    %cst_7 = arith.constant 0.797884583 : f32
    %13 = vector.broadcast %cst_7 : f32 to vector<12x32xf32>
    %14 = arith.mulf %13, %12 : vector<12x32xf32>
    %15 = math.tanh %14 : vector<12x32xf32>
    %cst_8 = arith.constant 1.000000e+00 : f32
    %16 = vector.broadcast %cst_8 : f32 to vector<12x32xf32>
    %17 = arith.addf %16, %15 : vector<12x32xf32>
    %18 = arith.mulf %7, %17 : vector<12x32xf32>
    %c0_9 = arith.constant 0 : index
    %c0_10 = arith.constant 0 : index
    %19 = vector.load %arg3[%c0_9, %c0_10] : memref<12x32xf32, #tpu.memory_space<vmem>>, vector<12x32xf32>
    tpu.vector_store %arg3[%c0_9, %c0_10], %18 {strides = array<i32>} : memref<12x32xf32, #tpu.memory_space<vmem>>, vector<12x32xf32>,
    return
  }
}

</mosaic_0001>

<llo_original>
// kernel: tpu_custom_call.1
$region0: #{tpu_custom_call.1}
  #allocation0 [shape = 'u32[]', space=smem, size = 0x4, offset = 0x4, fixed_abs, tag = 'smem constant byte address 0x4 - core index']
  #allocation1 [shape = 'u32[144,128]{1,0:T(1,128)}', space=vmem, size = 0x12000, scoped, tag = 'internal scratch']
  %s0 = inlined_call_operand.hbm [shape: bf16[12,16], index: 0, kind: input, shape index: {}]
  %s1 = inlined_call_operand.hbm [shape: bf16[16,32], index: 1, kind: input, shape index: {}]
  %s2 = inlined_call_operand.vmem [shape: f32[1,32], index: 2, kind: input, shape index: {}]
  %s3 = inlined_call_operand.hbm [shape: f32[12,32], index: 3, kind: output, shape index: {}]
  %s4 = sld [smem:[#allocation0]]
  $region30: #{tpu_custom_call.1} parent=0
    _
  %s6 = ssub.s32 1, %s4
  %s7 = scalar_select 0, %s6, %s4
  $region1: #{tpu_custom_call.1} parent=0
    #allocation2 [shape = 'u8[4096]{0}', space=vmem, size = 0x1000, scoped, tag = 'input window, operand 0, single buffered']
    #allocation3 [shape = 's32[1]{0}', space=sflag, size = 0x4, scoped, tag = 'scoped memory for tpu_custom_call.1']
    #allocation4 [shape = 's32[1]{0}', space=sflag, size = 0x4, scoped, tag = 'scoped memory for tpu_custom_call.1']
    #allocation5 [shape = 'u8[4096]{0}', space=vmem, size = 0x1000, scoped, tag = 'input window, operand 1, single buffered']
    #allocation6 [shape = 's32[1]{0}', space=sflag, size = 0x4, scoped, tag = 'scoped memory for tpu_custom_call.1']
    #allocation7 [shape = 'u8[8192]{0}', space=vmem, size = 0x2000, scoped, tag = 'output window, operand 0, single buffered']
    %8 = vsyncpa [#allocation3], 0
    %9 = vsyncpa [#allocation6], 0
    %10 = vsyncpa [#allocation4], 0
    // Predicated region
    $region2: #{tpu_custom_call.1} parent=1 // pred_check
      _
    $region3: #{tpu_custom_call.1} parent=1 // pred_check_branch
      %12 = sbr.rel (0) target = $region5
    $region4: #{tpu_custom_call.1} parent=1 // pred_region
      %s14 = ssub.s32 128, 128
      %15 = vsyncadd [#allocation3], %s14
      %s16 = sshll.u32 [#allocation2], 4
      %s17 = int_to_ptr.vmem [resolvable:$true] %s16
      %22 = dma.hbm_to_vmem [thread:$0]  %s0, 128, %s17, [#allocation3], 64, 64, 4
    $region5: #{tpu_custom_call.1} parent=1 // pred_fallthru
      _
    // Predicated region
    $region6: #{tpu_custom_call.1} parent=1 // pred_check
      _
    $region7: #{tpu_custom_call.1} parent=1 // pred_check_branch
      %24 = sbr.rel (0) target = $region9
    $region8: #{tpu_custom_call.1} parent=1 // pred_region
      %s26 = ssub.s32 128, 128
      %27 = vsyncadd [#allocation6], %s26
      %s28 = sshll.u32 [#allocation5], 4
      %s29 = int_to_ptr.vmem [resolvable:$true] %s28
      %34 = dma.hbm_to_vmem [thread:$0]  %s1, 128, %s29, [#allocation6], 64, 64, 4
    $region9: #{tpu_custom_call.1} parent=1 // pred_fallthru
      _
    // Predicated region
    $region10: #{tpu_custom_call.1} parent=1 // pred_check
      _
    $region11: #{tpu_custom_call.1} parent=1 // pred_check_branch
      %36 = sbr.rel (0) target = $region13
    $region12: #{tpu_custom_call.1} parent=1 // pred_region
      _
    $region13: #{tpu_custom_call.1} parent=1 // pred_fallthru
      _
    // Predicated region
    $region14: #{tpu_custom_call.1} parent=1 // pred_check
      _
    $region15: #{tpu_custom_call.1} parent=1 // pred_check_branch
      %38 = sbr.rel (0) target = $region17
    $region16: #{tpu_custom_call.1} parent=1 // pred_region
      %39 = dma.done [#allocation3], 128
    $region17: #{tpu_custom_call.1} parent=1 // pred_fallthru
      _
    // Predicated region
    $region18: #{tpu_custom_call.1} parent=1 // pred_check
      _
    $region19: #{tpu_custom_call.1} parent=1 // pred_check_branch
      %41 = sbr.rel (0) target = $region21
    $region20: #{tpu_custom_call.1} parent=1 // pred_region
      %42 = dma.done [#allocation6], 128
    $region21: #{tpu_custom_call.1} parent=1 // pred_fallthru
      _
    %v44 = vld [vmem:[#allocation2] sm:$0xf]
    %v45 = vld [vmem:[#allocation2 + $0x4] sm:$0x3]
    %v46 = vld [vmem:[#allocation5] sm:$0xf]
    %v47 = vld [vmem:[#allocation5 + $0x4] sm:$0xf]
    %v48 = vld [vmem:[%s2] sm:$0x1]
    %v50 = vlaneseq
    %v51 = vshrl.u32 %v50, 7
    %v52 = vsub.s32 0, %v51
    %v53 = vrot.slane %v48, %v52
    %v57 = vunpack.c.l.b16 %v44
    %v58 = vunpack.c.l.b16 %v45
    %v59 = vpack.c.b16 %v58, %v57
    %v62 = vunpack.c.l.b16 %v46
    %v63 = vunpack.c.l.b16 %v47
    %v64 = vpack.c.b16 %v63, %v62
    %vm66 = vcmask 130048
    %v68 = vsel %vm66, %v59, 0
    %70 = vmatprep.subr.bf16.mxu0 0
    %71 = vmatpush1.bf16.msra.mxu0 0
    %72 = vmatprep.subr.bf16.mxu0 0
    %73 = vmatpush1.bf16.msra.mxu0 0
    %74 = vmatprep.subr.bf16.mxu0 0
    %75 = vmatpush1.bf16.msra.mxu0 0
    %76 = vmatprep.subr.bf16.mxu0 0
    %77 = vmatpush1.bf16.msra.mxu0 0
    %78 = vmatprep.subr.bf16.mxu0 0
    %79 = vmatpush1.bf16.msra.mxu0 0
    %80 = vmatprep.subr.bf16.mxu0 0
    %81 = vmatpush1.bf16.msra.mxu0 0
    %82 = vmatprep.subr.bf16.mxu0 0
    %83 = vmatpush1.bf16.msra.mxu0 0
    %84 = vmatprep.subr.bf16.mxu0 0
    %85 = vmatpush1.bf16.msra.mxu0 %v64
    %86 = vmatprep.subr.bf16.mxu0 0
    %87 = vmatpush2.bf16.msra.mxu0 0
    %88 = vmatprep.subr.bf16.mxu0 0
    %89 = vmatpush2.bf16.msra.mxu0 0
    %90 = vmatprep.subr.bf16.mxu0 0
    %91 = vmatpush2.bf16.msra.mxu0 0
    %92 = vmatprep.subr.bf16.mxu0 0
    %93 = vmatpush2.bf16.msra.mxu0 0
    %94 = vmatprep.subr.bf16.mxu0 0
    %95 = vmatpush2.bf16.msra.mxu0 0
    %96 = vmatprep.subr.bf16.mxu0 0
    %97 = vmatpush2.bf16.msra.mxu0 0
    %98 = vmatprep.subr.bf16.mxu0 0
    %99 = vmatpush2.bf16.msra.mxu0 0
    %100 = vmatprep.subr.bf16.mxu0 0
    %101 = vmatpush2.bf16.msra.mxu0 0
    %102 = vmatprep.mubr.bf16.mxu0 0
    %103 = vmatmul.mubr.bf16.gmra.mxu0 %v68
    %v104 = vpop.f32.mrf.mxu0
    %v105 = vadd.f32 %v53, %v104
    %v106 = vpop.f32.mrf.mxu0
    %v107 = vpop.f32.mrf.mxu0
    %v108 = vadd.f32 %v53, %v107
    %v109 = vpop.f32.mrf.mxu0
    %110 = vdwg.mxu0
    %v111 = vmul.f32 %v105, 0.5
    %v112 = vmul.f32 %v108, 0.5
    %v113 = vmul.f32 %v105, 0.044715
    %v114 = vmul.f32 %v108, 0.044715
    %v115 = vmul.f32 %v113, %v105
    %v116 = vmul.f32 %v114, %v108
    %v117 = vmul.f32 %v115, %v105
    %v118 = vmul.f32 %v116, %v108
    %v119 = vadd.f32 %v105, %v117
    %v120 = vadd.f32 %v108, %v118
    %v121 = vmul.f32 %v119, 0.7978846
    %v122 = vmul.f32 %v120, 0.7978846
    %v123 = vtanh.pop %v121
    %v124 = vtanh.pop %v122
    %v125 = vadd.f32 %v123, 1.0
    %v126 = vadd.f32 %v124, 1.0
    %v127 = vmul.f32 %v111, %v125
    %v128 = vmul.f32 %v112, %v126
    %vm129 = vcmask 261120
    %130 = vst.msk [vmem:[#allocation7] sm:$0xff] %vm129, %v127
    %vm131 = vcmask 257024
    %132 = vst.msk [vmem:[#allocation7 + $0x8] sm:$0xf] %vm131, %v128
    // Predicated region
    $region22: #{tpu_custom_call.1} parent=1 // pred_check
      _
    $region23: #{tpu_custom_call.1} parent=1 // pred_check_branch
      %134 = sbr.rel (0) target = $region25
    $region24: #{tpu_custom_call.1} parent=1 // pred_region
      %s136 = ssub.s32 256, 256
      %137 = vsyncadd [#allocation4], %s136
      %s138 = sshll.u32 [#allocation7], 4
      %s139 = int_to_ptr.vmem [resolvable:$true] %s138
      %144 = dma.vmem_to_hbm [thread:$0]  %s139, 256, %s3, [#allocation4], 128, 128, 8
    $region25: #{tpu_custom_call.1} parent=1 // pred_fallthru
      _
    // Predicated region
    $region26: #{tpu_custom_call.1} parent=1 // pred_check
      _
    $region27: #{tpu_custom_call.1} parent=1 // pred_check_branch
      %146 = sbr.rel (0) target = $region29
    $region28: #{tpu_custom_call.1} parent=1 // pred_region
      %147 = dma.done [#allocation4], 256
    $region29: #{tpu_custom_call.1} parent=1 // pred_fallthru
      _
    %148 = vsyncpa [#allocation3], 1
    %149 = vsyncpa [#allocation6], 1
    %150 = vsyncpa [#allocation4], 1

</llo_original>
